<compile_context>
chip_gen: v6e
topology: v6e:2x2x1
jax: 0.10.0
libtpu: 0.0.40
codegen_flags: <defaults>
</compile_context>

<pallas_src>
import functools

import jax
import jax.numpy as jnp
from jax.experimental import pallas as pl
from jax.experimental.pallas import tpu as pltpu

EPS = 1e-5
NC_PAD = 128                              # lane-dense padded output width
_TARGET_X_BLOCK_BYTES = 2 * 1024 * 1024   # ~2 MiB streamed x block per grid step


def _round_up(x, m):
    return (x + m - 1) // m * m


def _pick_tb(batch, row_bytes):
    """Rows per grid step: ~2 MiB x blocks, multiple of 8, and >=2 grid steps
    (both v7x TensorCores) whenever the batch allows."""
    target = max(8, (_TARGET_X_BLOCK_BYTES // row_bytes) // 8 * 8)
    if batch > target:
        return target
    if batch >= 16:
        return max(8, _round_up(-(-batch // 2), 8))   # ceil(batch/2) -> x8
    return batch


def _vmem_limit(tb, hw, k2, c2, wbd_bytes, slab_bytes):
    x_blk = tb * hw * 4
    out_blk = tb * NC_PAD * 4
    interm = tb * (k2 + c2 + NC_PAD) * 4
    need = 2 * (x_blk + out_blk) + 2 * (wbd_bytes + slab_bytes) + 3 * interm + (2 << 20)
    # Explicit limit: raises v5e's 16 MiB default when needed, stays under
    # v7x's 64 MiB physical VMEM.
    return int(min(max(need, 16 << 20), 48 << 20))


def _fnirsnet_kernel(x_ref, wbd_ref, slab_ref, out_ref, *,
                     K2, C2, r_wfc, r_bias, approx_sigmoid):
    def sigmoid(v):
        e = jnp.exp(-v)
        if approx_sigmoid:
            # EUP approximate reciprocal keeps the divide off the VPU critical
            # path when EUP/VPU bound (slightly looser numerics).
            return pl.reciprocal(1.0 + e, approx=True)
        return 1.0 / (1.0 + e)

    # Packed grid-invariant slab (tiny; resident in VMEM).
    slab = slab_ref[...]
    wcomb = slab[0:K2, 0:C2]                    # fused depthwise+pointwise (+BN2)
    wfc = slab[r_wfc:r_wfc + C2, 0:NC_PAD]      # fc weight, lane padded
    bias = slab[r_bias:r_bias + 8, :]
    b1 = bias[0:1, 0:K2]                        # conv1+BN1 bias tiled over H
    bp = bias[1:2, 0:C2]                        # fused dw/pw + BN2 bias
    bfc = bias[2:3, 0:NC_PAD]                   # fc bias, zero padded

    x = x_ref[...]                                                    # (TB, H*W)
    # conv1 (+BN1) as block-diagonal matmul, sigmoid
    a1 = sigmoid(jnp.dot(x, wbd_ref[...],
                         preferred_element_type=jnp.float32) + b1)    # (TB, H*C1)
    # fused depthwise + pointwise (+BN2), sigmoid
    a2 = sigmoid(jnp.dot(a1, wcomb,
                         preferred_element_type=jnp.float32) + bp)    # (TB, C2)
    # fc, lane-dense padded output
    out = jnp.dot(a2, wfc, preferred_element_type=jnp.float32) + bfc  # (TB, NC_PAD)
    out_ref[...] = out.astype(out_ref.dtype)


def fnirsnet_forward(x, p, *, approx_sigmoid=False):
    """x: (B, 1, H, W) float32 (NCHW). Returns (B, num_class) float32."""
    B, Cin, H, W = x.shape
    assert Cin == 1
    C1 = p["w1"].shape[0]
    C2 = p["wp"].shape[0]
    NC = p["wfc"].shape[0]
    HW, K2 = H * W, H * C1
    LW = _round_up(max(K2, C2, NC_PAD), 128)    # slab lane width
    assert NC <= NC_PAD and C2 <= LW and K2 <= LW, "channel config too wide for slab"

    f32 = jnp.float32
    # ---- plain-JAX glue: fold BN (eval mode) & restructure weights ----
    s1 = p["g1"] / jnp.sqrt(p["v1"] + EPS)
    t1 = p["beta1"] - p["m1"] * s1
    w1_t = p["w1"][:, 0, 0, :].T * s1[None, :]                 # (W, C1), BN1 folded
    b1 = p["b1"] * s1 + t1                                     # (C1,)
    w_bd = jnp.kron(jnp.eye(H, dtype=f32), w1_t)               # (H*W, H*C1) block-diag
    b1_tiled = jnp.tile(b1, H)                                 # (H*C1,)

    s2 = p["g2"] / jnp.sqrt(p["v2"] + EPS)
    t2 = p["beta2"] - p["m2"] * s2
    wp_t = p["wp"][:, :, 0, 0].T * s2[None, :]                 # (C1, C2), BN2 folded
    wd_t = p["wd"][:, 0, :, 0].T                               # (H, C1)
    wcomb = (wd_t[:, :, None] * wp_t[None, :, :]).reshape(K2, C2)
    bp = p["bd"] @ wp_t + p["bp"] * s2 + t2                    # (C2,)

    # pack all grid-invariant small operands into one lane-padded slab
    r_wfc = _round_up(K2, 8)
    r_bias = r_wfc + _round_up(C2, 8)
    n_rows = r_bias + 8
    slab = jnp.zeros((n_rows, LW), f32)
    slab = slab.at[0:K2, 0:C2].set(wcomb)
    slab = slab.at[r_wfc:r_wfc + C2, 0:NC].set(p["wfc"].T)
    slab = slab.at[r_bias, 0:K2].set(b1_tiled)
    slab = slab.at[r_bias + 1, 0:C2].set(bp)
    slab = slab.at[r_bias + 2, 0:NC].set(p["bfc"])

    # ---- flatten x in the wrapper, tile the batch ----
    x2 = x.reshape(B, HW)
    TB = _pick_tb(B, HW * 4)
    Bp = pl.cdiv(B, TB) * TB
    if Bp > B:
        x2 = jnp.pad(x2, ((0, Bp - B), (0, 0)))
    grid = (Bp // TB,)

    kernel = functools.partial(_fnirsnet_kernel, K2=K2, C2=C2, r_wfc=r_wfc,
                               r_bias=r_bias, approx_sigmoid=approx_sigmoid)

    out = pl.pallas_call(
        kernel,
        out_shape=jax.ShapeDtypeStruct((Bp, NC_PAD), f32),
        grid=grid,
        in_specs=[
            pl.BlockSpec((TB, HW), lambda i: (i, 0)),       # streamed x tile
            pl.BlockSpec((HW, K2), lambda i: (0, 0)),       # block-diag conv1 weight
            pl.BlockSpec((n_rows, LW), lambda i: (0, 0)),   # packed small weights/biases
        ],
        out_specs=pl.BlockSpec((TB, NC_PAD), lambda i: (i, 0)),
        compiler_params=pltpu.CompilerParams(
            dimension_semantics=("parallel",),
            vmem_limit_bytes=_vmem_limit(TB, HW, K2, C2,
                                         w_bd.size * 4, slab.size * 4),
        ),
    )(x2, w_bd, slab)
    return out[:B, :NC]                                      # (B, num_class)


def ref_forward(x, p):
    """Pure-JAX reference matching the PyTorch eval-mode forward."""
    a1 = jnp.einsum("bhw,cw->bch", x[:, 0], p["w1"][:, 0, 0, :]) + p["b1"][None, :, None]
    a1 = (a1 - p["m1"][None, :, None]) / jnp.sqrt(p["v1"] + EPS)[None, :, None] \
         * p["g1"][None, :, None] + p["beta1"][None, :, None]
    a1 = jax.nn.sigmoid(a1)
    d = jnp.einsum("bch,ch->bc", a1, p["wd"][:, 0, :, 0]) + p["bd"][None, :]
    pt = d @ p["wp"][:, :, 0, 0].T + p["bp"][None, :]
    a2 = (pt - p["m2"]) / jnp.sqrt(p["v2"] + EPS) * p["g2"] + p["beta2"]
    a2 = jax.nn.sigmoid(a2)
    return a2 @ p["wfc"].T + p["bfc"][None, :]


def init_params(key, num_class, W, H, C1, C2):
    ks = jax.random.split(key, 8)
    f32 = jnp.float32
    return {
        # conv1: Conv2d(1, C1, kernel=(1, W))
        "w1": 0.1 * jax.random.normal(ks[0], (C1, 1, 1, W), f32),
        "b1": 0.1 * jax.random.normal(ks[1], (C1,), f32),
        # bn1
        "g1": 1.0 + 0.1 * jnp.arange(C1, dtype=f32),
        "beta1": 0.05 * jnp.arange(C1, dtype=f32),
        "m1": 0.01 * jnp.arange(C1, dtype=f32),
        "v1": 1.0 + 0.02 * jnp.arange(C1, dtype=f32),
        # depthwise conv: Conv2d(C1, C1, kernel=(H,1), groups=C1)
        "wd": 0.1 * jax.random.normal(ks[2], (C1, 1, H, 1), f32),
        "bd": 0.1 * jax.random.normal(ks[3], (C1,), f32),
        # pointwise conv: Conv2d(C1, C2, kernel=1)
        "wp": 0.1 * jax.random.normal(ks[4], (C2, C1, 1, 1), f32),
        "bp": 0.1 * jax.random.normal(ks[5], (C2,), f32),
        # bn2
        "g2": 1.0 + 0.1 * jnp.arange(C2, dtype=f32),
        "beta2": 0.05 * jnp.arange(C2, dtype=f32),
        "m2": 0.01 * jnp.arange(C2, dtype=f32),
        "v2": 1.0 + 0.02 * jnp.arange(C2, dtype=f32),
        # fc: Linear(C2, num_class)
        "wfc": 0.1 * jax.random.normal(ks[6], (num_class, C2), f32),
        "bfc": 0.1 * jax.random.normal(ks[7], (num_class,), f32),
    }


if __name__ == "__main__":
    # small shapes: num_class=3, DHRConv_width=16, DWConv_height=16,
    # num_DHRConv=4, num_DWConv=8, batch=2
    B, H, W, C1, C2, NC = 2, 16, 16, 4, 8, 3
    key = jax.random.PRNGKey(0)
    kx, kp = jax.random.split(key)
    x = jax.random.normal(kx, (B, 1, H, W), jnp.float32)
    params = init_params(kp, NC, W, H, C1, C2)

    out = fnirsnet_forward(x, params)
    out = jax.block_until_ready(out)

    ref = ref_forward(x, params)
    assert out.shape == (B, NC)
    err = float(jnp.max(jnp.abs(out - ref)))
    assert jnp.allclose(out, ref, rtol=1e-4, atol=1e-4), f"max abs err {err}"
    print("KERNEL_OK")
</pallas_src>

<mosaic_0001>
module attributes {stable_mosaic.version = 11 : i64} {
  func.func @_fnirsnet_kernel(%arg0: i32, %arg1: memref<2x256xf32, #tpu.memory_space<vmem>>, %arg2: memref<256x64xf32, #tpu.memory_space<vmem>>, %arg3: memref<80x128xf32, #tpu.memory_space<vmem>>, %arg4: memref<2x128xf32, #tpu.memory_space<vmem>>) attributes {dimension_semantics = [#tpu.dimension_semantics<parallel>], iteration_bounds = array<i64: 1>, scalar_prefetch = 0 : i64, scratch_operands = 0 : i64, tpu.core_type = #tpu.core_type<tc>, window_params = [{transform_indices = @transform_0, window_bounds = array<i64: 2, 256>}, {pipeline_mode = #tpu.pipeline_mode<synchronous>, transform_indices = @transform_1, window_bounds = array<i64: 256, 64>}, {pipeline_mode = #tpu.pipeline_mode<synchronous>, transform_indices = @transform_2, window_bounds = array<i64: 80, 128>}, {transform_indices = @transform_3, window_bounds = array<i64: 2, 128>}]} {
    %c0 = arith.constant 0 : index
    %c0_0 = arith.constant 0 : index
    %0 = vector.load %arg3[%c0, %c0_0] : memref<80x128xf32, #tpu.memory_space<vmem>>, vector<80x128xf32>
    %1 = vector.extract_strided_slice %0 {offsets = [0, 0], sizes = [64, 8], strides = [1, 1]} : vector<80x128xf32> to vector<64x8xf32>
    %2 = vector.extract_strided_slice %0 {offsets = [64, 0], sizes = [8, 128], strides = [1, 1]} : vector<80x128xf32> to vector<8x128xf32>
    %3 = vector.extract_strided_slice %0 {offsets = [72, 0], sizes = [8, 128], strides = [1, 1]} : vector<80x128xf32> to vector<8x128xf32>
    %4 = vector.extract_strided_slice %3 {offsets = [0, 0], sizes = [1, 64], strides = [1, 1]} : vector<8x128xf32> to vector<1x64xf32>
    %5 = vector.extract_strided_slice %3 {offsets = [1, 0], sizes = [1, 8], strides = [1, 1]} : vector<8x128xf32> to vector<1x8xf32>
    %6 = vector.extract_strided_slice %3 {offsets = [2, 0], sizes = [1, 128], strides = [1, 1]} : vector<8x128xf32> to vector<1x128xf32>
    %c0_1 = arith.constant 0 : index
    %c0_2 = arith.constant 0 : index
    %7 = vector.load %arg1[%c0_1, %c0_2] : memref<2x256xf32, #tpu.memory_space<vmem>>, vector<2x256xf32>
    %c0_3 = arith.constant 0 : index
    %c0_4 = arith.constant 0 : index
    %8 = vector.load %arg2[%c0_3, %c0_4] : memref<256x64xf32, #tpu.memory_space<vmem>>, vector<256x64xf32>
    %cst = arith.constant dense<0.000000e+00> : vector<2x64xf32>
    %9 = tpu.matmul %7, %8, %cst {dimension_numbers = #tpu.dot_dimension_numbers<[1], [0], [0], [1], [0, 0, 1, 1], [], []>} : vector<2x256xf32>, vector<256x64xf32>, vector<2x64xf32> -> vector<2x64xf32>
    %10 = vector.broadcast %4 : vector<1x64xf32> to vector<2x64xf32>
    %11 = arith.addf %9, %10 : vector<2x64xf32>
    %cst_5 = arith.constant 0.000000e+00 : f32
    %12 = vector.broadcast %cst_5 : f32 to vector<2x64xf32>
    %13 = arith.subf %12, %11 : vector<2x64xf32>
    %14 = math.exp %13 : vector<2x64xf32>
    %cst_6 = arith.constant 1.000000e+00 : f32
    %15 = vector.broadcast %cst_6 : f32 to vector<2x64xf32>
    %16 = arith.addf %15, %14 : vector<2x64xf32>
    %cst_7 = arith.constant 1.000000e+00 : f32
    %17 = vector.broadcast %cst_7 : f32 to vector<2x64xf32>
    %18 = arith.divf %17, %16 : vector<2x64xf32>
    %cst_8 = arith.constant dense<0.000000e+00> : vector<2x8xf32>
    %19 = tpu.matmul %18, %1, %cst_8 {dimension_numbers = #tpu.dot_dimension_numbers<[1], [0], [0], [1], [0, 0, 1, 1], [], []>} : vector<2x64xf32>, vector<64x8xf32>, vector<2x8xf32> -> vector<2x8xf32>
    %20 = vector.broadcast %5 : vector<1x8xf32> to vector<2x8xf32>
    %21 = arith.addf %19, %20 : vector<2x8xf32>
    %cst_9 = arith.constant 0.000000e+00 : f32
    %22 = vector.broadcast %cst_9 : f32 to vector<2x8xf32>
    %23 = arith.subf %22, %21 : vector<2x8xf32>
    %24 = math.exp %23 : vector<2x8xf32>
    %cst_10 = arith.constant 1.000000e+00 : f32
    %25 = vector.broadcast %cst_10 : f32 to vector<2x8xf32>
    %26 = arith.addf %25, %24 : vector<2x8xf32>
    %cst_11 = arith.constant 1.000000e+00 : f32
    %27 = vector.broadcast %cst_11 : f32 to vector<2x8xf32>
    %28 = arith.divf %27, %26 : vector<2x8xf32>
    %cst_12 = arith.constant dense<0.000000e+00> : vector<2x128xf32>
    %29 = tpu.matmul %28, %2, %cst_12 {dimension_numbers = #tpu.dot_dimension_numbers<[1], [0], [0], [1], [0, 0, 1, 1], [], []>} : vector<2x8xf32>, vector<8x128xf32>, vector<2x128xf32> -> vector<2x128xf32>
    %30 = vector.broadcast %6 : vector<1x128xf32> to vector<2x128xf32>
    %31 = arith.addf %29, %30 : vector<2x128xf32>
    %c0_13 = arith.constant 0 : index
    %c0_14 = arith.constant 0 : index
    %32 = vector.load %arg4[%c0_13, %c0_14] : memref<2x128xf32, #tpu.memory_space<vmem>>, vector<2x128xf32>
    tpu.vector_store %arg4[%c0_13, %c0_14], %31 {strides = array<i32>} : memref<2x128xf32, #tpu.memory_space<vmem>>, vector<2x128xf32>,
    return
  }
  func.func @transform_0(%arg0: i32) -> (i32, i32) {
    %c0_i32 = arith.constant 0 : i32
    %c0_i32_0 = arith.constant 0 : i32
    return %arg0, %c0_i32 : i32, i32
  }
  func.func @transform_1(%arg0: i32) -> (i32, i32) {
    %c0_i32 = arith.constant 0 : i32
    %c0_i32_0 = arith.constant 0 : i32
    %c0_i32_1 = arith.constant 0 : i32
    return %c0_i32, %c0_i32_0 : i32, i32
  }
  func.func @transform_2(%arg0: i32) -> (i32, i32) {
    %c0_i32 = arith.constant 0 : i32
    %c0_i32_0 = arith.constant 0 : i32
    %c0_i32_1 = arith.constant 0 : i32
    return %c0_i32, %c0_i32_0 : i32, i32
  }
  func.func @transform_3(%arg0: i32) -> (i32, i32) {
    %c0_i32 = arith.constant 0 : i32
    %c0_i32_0 = arith.constant 0 : i32
    return %arg0, %c0_i32 : i32, i32
  }
}

</mosaic_0001>

<llo_original>
// kernel: tpu_custom_call.1
$region0: #{tpu_custom_call.1}
  #allocation0 [shape = 'u32[]', space=smem, size = 0x4, offset = 0x4, fixed_abs, tag = 'smem constant byte address 0x4 - core index']
  #allocation1 [shape = 'u32[144,128]{1,0:T(1,128)}', space=vmem, size = 0x12000, scoped, tag = 'internal scratch']
  %s0 = inlined_call_operand.vmem [shape: f32[2,256], index: 0, kind: input, shape index: {}]
  %s1 = inlined_call_operand.vmem [shape: f32[256,64], index: 1, kind: input, shape index: {}]
  %s2 = inlined_call_operand.vmem [shape: f32[80,128], index: 2, kind: input, shape index: {}]
  %s3 = inlined_call_operand.hbm [shape: f32[2,128], index: 3, kind: output, shape index: {}]
  %s4 = sld [smem:[#allocation0]]
  $region22: #{tpu_custom_call.1} parent=0
    _
  %s6 = ssub.s32 1, %s4
  %s7 = scalar_select 0, %s6, %s4
  $region1: #{tpu_custom_call.1} parent=0
    #allocation2 [shape = 'u8[1024]{0}', space=vmem, size = 0x400, scoped, tag = 'output window, operand 0, single buffered']
    #allocation3 [shape = 's32[1]{0}', space=sflag, size = 0x4, scoped, tag = 'scoped memory for tpu_custom_call.1']
    %8 = vsyncpa [#allocation3], 0
    // Predicated region
    $region2: #{tpu_custom_call.1} parent=1 // pred_check
      _
    $region3: #{tpu_custom_call.1} parent=1 // pred_check_branch
      %10 = sbr.rel (0) target = $region5
    $region4: #{tpu_custom_call.1} parent=1 // pred_region
      _
    $region5: #{tpu_custom_call.1} parent=1 // pred_fallthru
      _
    // Predicated region
    $region6: #{tpu_custom_call.1} parent=1 // pred_check
      _
    $region7: #{tpu_custom_call.1} parent=1 // pred_check_branch
      %12 = sbr.rel (0) target = $region9
    $region8: #{tpu_custom_call.1} parent=1 // pred_region
      _
    $region9: #{tpu_custom_call.1} parent=1 // pred_fallthru
      _
    // Predicated region
    $region10: #{tpu_custom_call.1} parent=1 // pred_check
      _
    $region11: #{tpu_custom_call.1} parent=1 // pred_check_branch
      %14 = sbr.rel (0) target = $region13
    $region12: #{tpu_custom_call.1} parent=1 // pred_region
      _
    $region13: #{tpu_custom_call.1} parent=1 // pred_fallthru
      _
    %v15 = vld [vmem:[%s2] sm:$0xff]
    %v16 = vld [vmem:[%s2 + $0x8] sm:$0xff]
    %v17 = vld [vmem:[%s2 + $0x10] sm:$0xff]
    %v18 = vld [vmem:[%s2 + $0x18] sm:$0xff]
    %v19 = vld [vmem:[%s2 + $0x20] sm:$0xff]
    %v20 = vld [vmem:[%s2 + $0x28] sm:$0xff]
    %v21 = vld [vmem:[%s2 + $0x30] sm:$0xff]
    %v22 = vld [vmem:[%s2 + $0x38] sm:$0xff]
    %v23 = vld [vmem:[%s2 + $0x40] sm:$0xff]
    %v24 = vld [vmem:[%s2 + $0x48] sm:$0xff]
    %v25 = vld [vmem:[%s0] sm:$0xf]
    %v26 = vld [vmem:[%s1] sm:$0xff]
    %v27 = vld [vmem:[%s1 + $0x8] sm:$0xff]
    %v28 = vld [vmem:[%s1 + $0x10] sm:$0xff]
    %v29 = vld [vmem:[%s1 + $0x18] sm:$0xff]
    %v30 = vld [vmem:[%s1 + $0x20] sm:$0xff]
    %v31 = vld [vmem:[%s1 + $0x28] sm:$0xff]
    %v32 = vld [vmem:[%s1 + $0x30] sm:$0xff]
    %v33 = vld [vmem:[%s1 + $0x38] sm:$0xff]
    %v34 = vld [vmem:[%s1 + $0x40] sm:$0xff]
    %v35 = vld [vmem:[%s1 + $0x48] sm:$0xff]
    %v36 = vld [vmem:[%s1 + $0x50] sm:$0xff]
    %v37 = vld [vmem:[%s1 + $0x58] sm:$0xff]
    %v38 = vld [vmem:[%s1 + $0x60] sm:$0xff]
    %v39 = vld [vmem:[%s1 + $0x68] sm:$0xff]
    %v40 = vld [vmem:[%s1 + $0x70] sm:$0xff]
    %v41 = vld [vmem:[%s1 + $0x78] sm:$0xff]
    %v42 = vld [vmem:[%s1 + $0x80] sm:$0xff]
    %v43 = vld [vmem:[%s1 + $0x88] sm:$0xff]
    %v44 = vld [vmem:[%s1 + $0x90] sm:$0xff]
    %v45 = vld [vmem:[%s1 + $0x98] sm:$0xff]
    %v46 = vld [vmem:[%s1 + $0xa0] sm:$0xff]
    %v47 = vld [vmem:[%s1 + $0xa8] sm:$0xff]
    %v48 = vld [vmem:[%s1 + $0xb0] sm:$0xff]
    %v49 = vld [vmem:[%s1 + $0xb8] sm:$0xff]
    %v50 = vld [vmem:[%s1 + $0xc0] sm:$0xff]
    %v51 = vld [vmem:[%s1 + $0xc8] sm:$0xff]
    %v52 = vld [vmem:[%s1 + $0xd0] sm:$0xff]
    %v53 = vld [vmem:[%s1 + $0xd8] sm:$0xff]
    %v54 = vld [vmem:[%s1 + $0xe0] sm:$0xff]
    %v55 = vld [vmem:[%s1 + $0xe8] sm:$0xff]
    %v56 = vld [vmem:[%s1 + $0xf0] sm:$0xff]
    %v57 = vld [vmem:[%s1 + $0xf8] sm:$0xff]
    %v58 = vlaneseq
    %v59 = vshrl.u32 %v58, 7
    %v60 = vsub.s32 0, %v59
    %v61 = vrot.slane %v24, %v60
    %v64 = vunpack.c.l.s4 1983009808
    %v65 = vunpack.c.0.s8 %v64
    %v66 = vlaneseq
    %v67 = vshrl.u32 %v66, 7
    %v68 = vsub.s32 %v65, %v67
    %v69 = vrot.slane %v25, %v68
    %v70 = vcombine.high %v69, %v69
    %73 = vmatprep.subr.mxu0 0.0
    %74 = vmatpush1.msra.mxu0 %v41
    %75 = vmatprep.subr.mxu0 0.0
    %76 = vmatpush1.msra.mxu0 %v40
    %77 = vmatprep.subr.mxu0 0.0
    %78 = vmatpush1.msra.mxu0 %v39
    %79 = vmatprep.subr.mxu0 0.0
    %80 = vmatpush1.msra.mxu0 %v38
    %81 = vmatprep.subr.mxu0 0.0
    %82 = vmatpush1.msra.mxu0 %v37
    %83 = vmatprep.subr.mxu0 0.0
    %84 = vmatpush1.msra.mxu0 %v36
    %85 = vmatprep.subr.mxu0 0.0
    %86 = vmatpush1.msra.mxu0 %v35
    %87 = vmatprep.subr.mxu0 0.0
    %88 = vmatpush1.msra.mxu0 %v34
    %89 = vmatprep.subr.mxu0 0.0
    %90 = vmatpush1.msra.mxu0 %v33
    %91 = vmatprep.subr.mxu0 0.0
    %92 = vmatpush1.msra.mxu0 %v32
    %93 = vmatprep.subr.mxu0 0.0
    %94 = vmatpush1.msra.mxu0 %v31
    %95 = vmatprep.subr.mxu0 0.0
    %96 = vmatpush1.msra.mxu0 %v30
    %97 = vmatprep.subr.mxu0 0.0
    %98 = vmatpush1.msra.mxu0 %v29
    %99 = vmatprep.subr.mxu0 0.0
    %100 = vmatpush1.msra.mxu0 %v28
    %101 = vmatprep.subr.mxu0 0.0
    %102 = vmatpush1.msra.mxu0 %v27
    %103 = vmatprep.subr.mxu0 0.0
    %104 = vmatpush1.msra.mxu0 %v26
    %105 = vmatprep.subr.mxu0 0.0
    %106 = vmatpush2.msra.mxu0 %v57
    %107 = vmatprep.subr.mxu0 0.0
    %108 = vmatpush2.msra.mxu0 %v56
    %109 = vmatprep.subr.mxu0 0.0
    %110 = vmatpush2.msra.mxu0 %v55
    %111 = vmatprep.subr.mxu0 0.0
    %112 = vmatpush2.msra.mxu0 %v54
    %113 = vmatprep.subr.mxu0 0.0
    %114 = vmatpush2.msra.mxu0 %v53
    %115 = vmatprep.subr.mxu0 0.0
    %116 = vmatpush2.msra.mxu0 %v52
    %117 = vmatprep.subr.mxu0 0.0
    %118 = vmatpush2.msra.mxu0 %v51
    %119 = vmatprep.subr.mxu0 0.0
    %120 = vmatpush2.msra.mxu0 %v50
    %121 = vmatprep.subr.mxu0 0.0
    %122 = vmatpush2.msra.mxu0 %v49
    %123 = vmatprep.subr.mxu0 0.0
    %124 = vmatpush2.msra.mxu0 %v48
    %125 = vmatprep.subr.mxu0 0.0
    %126 = vmatpush2.msra.mxu0 %v47
    %127 = vmatprep.subr.mxu0 0.0
    %128 = vmatpush2.msra.mxu0 %v46
    %129 = vmatprep.subr.mxu0 0.0
    %130 = vmatpush2.msra.mxu0 %v45
    %131 = vmatprep.subr.mxu0 0.0
    %132 = vmatpush2.msra.mxu0 %v44
    %133 = vmatprep.subr.mxu0 0.0
    %134 = vmatpush2.msra.mxu0 %v43
    %135 = vmatprep.subr.mxu0 0.0
    %136 = vmatpush2.msra.mxu0 %v42
    %137 = vmatprep.mubr.f32.mxu0 %v70
    %138 = vmatmul.mubr.f32.gmra.mxu0 %v69
    %v139 = vpop.f32.mrf.mxu0
    %v140 = vadd.f32 %v61, %v139
    %v141 = vpop.f32.mrf.mxu0
    %142 = vdwg.mxu0
    %v143 = vsub.f32 0.0, %v140
    %v144 = vmul.f32 %v143, 1.442695
    %v145 = vpow.pop %v144
    %v146 = vadd.f32 %v145, 1.0
    %v147 = vrcp.pop %v146
    %v148 = vmul.f32 1.0, %v147
    %v149 = vlaneseq
    %v150 = vshrl.u32 %v149, 7
    %v151 = vsub.s32 1, %v150
    %v152 = vrot.slane %v24, %v151
    %vm153 = vcmask 523264
    %v155 = vsel %vm153, %v148, 0
    %157 = vmatprep.subr.mxu0 0.0
    %158 = vmatpush1.msra.mxu0 0.0
    %159 = vmatprep.subr.mxu0 0.0
    %160 = vmatpush1.msra.mxu0 0.0
    %161 = vmatprep.subr.mxu0 0.0
    %162 = vmatpush1.msra.mxu0 0.0
    %163 = vmatprep.subr.mxu0 0.0
    %164 = vmatpush1.msra.mxu0 0.0
    %165 = vmatprep.subr.mxu0 0.0
    %166 = vmatpush1.msra.mxu0 0.0
    %167 = vmatprep.subr.mxu0 0.0
    %168 = vmatpush1.msra.mxu0 0.0
    %169 = vmatprep.subr.mxu0 0.0
    %170 = vmatpush1.msra.mxu0 0.0
    %171 = vmatprep.subr.mxu0 0.0
    %172 = vmatpush1.msra.mxu0 0.0
    %173 = vmatprep.subr.mxu0 0.0
    %174 = vmatpush1.msra.mxu0 %v22
    %175 = vmatprep.subr.mxu0 0.0
    %176 = vmatpush1.msra.mxu0 %v21
    %177 = vmatprep.subr.mxu0 0.0
    %178 = vmatpush1.msra.mxu0 %v20
    %179 = vmatprep.subr.mxu0 0.0
    %180 = vmatpush1.msra.mxu0 %v19
    %181 = vmatprep.subr.mxu0 0.0
    %182 = vmatpush1.msra.mxu0 %v18
    %183 = vmatprep.subr.mxu0 0.0
    %184 = vmatpush1.msra.mxu0 %v17
    %185 = vmatprep.subr.mxu0 0.0
    %186 = vmatpush1.msra.mxu0 %v16
    %187 = vmatprep.subr.mxu0 0.0
    %188 = vmatpush1.msra.mxu0 %v15
    %189 = vmatprep.subr.mxu0 0.0
    %190 = vmatpush2.msra.mxu0 0.0
    %191 = vmatprep.subr.mxu0 0.0
    %192 = vmatpush2.msra.mxu0 0.0
    %193 = vmatprep.subr.mxu0 0.0
    %194 = vmatpush2.msra.mxu0 0.0
    %195 = vmatprep.subr.mxu0 0.0
    %196 = vmatpush2.msra.mxu0 0.0
    %197 = vmatprep.subr.mxu0 0.0
    %198 = vmatpush2.msra.mxu0 0.0
    %199 = vmatprep.subr.mxu0 0.0
    %200 = vmatpush2.msra.mxu0 0.0
    %201 = vmatprep.subr.mxu0 0.0
    %202 = vmatpush2.msra.mxu0 0.0
    %203 = vmatprep.subr.mxu0 0.0
    %204 = vmatpush2.msra.mxu0 0.0
    %205 = vmatprep.subr.mxu0 0.0
    %206 = vmatpush2.msra.mxu0 0.0
    %207 = vmatprep.subr.mxu0 0.0
    %208 = vmatpush2.msra.mxu0 0.0
    %209 = vmatprep.subr.mxu0 0.0
    %210 = vmatpush2.msra.mxu0 0.0
    %211 = vmatprep.subr.mxu0 0.0
    %212 = vmatpush2.msra.mxu0 0.0
    %213 = vmatprep.subr.mxu0 0.0
    %214 = vmatpush2.msra.mxu0 0.0
    %215 = vmatprep.subr.mxu0 0.0
    %216 = vmatpush2.msra.mxu0 0.0
    %217 = vmatprep.subr.mxu0 0.0
    %218 = vmatpush2.msra.mxu0 0.0
    %219 = vmatprep.subr.mxu0 0.0
    %220 = vmatpush2.msra.mxu0 0.0
    %221 = vmatprep.mubr.f32.mxu0 0.0
    %222 = vmatmul.mubr.f32.gmra.mxu0 %v155
    %v223 = vpop.f32.mrf.mxu0
    %v224 = vadd.f32 %v152, %v223
    %v225 = vpop.f32.mrf.mxu0
    %226 = vdwg.mxu0
    %v227 = vsub.f32 0.0, %v224
    %v228 = vmul.f32 %v227, 1.442695
    %v229 = vpow.pop %v228
    %v230 = vadd.f32 %v229, 1.0
    %v231 = vrcp.pop %v230
    %v232 = vmul.f32 1.0, %v231
    %v233 = vlaneseq
    %v234 = vshrl.u32 %v233, 7
    %v235 = vsub.s32 2, %v234
    %v236 = vrot.slane %v24, %v235
    %vm237 = vcmask 64512
    %v239 = vsel %vm237, %v232, 0
    %241 = vmatprep.subr.mxu0 0.0
    %242 = vmatpush1.msra.mxu0 0.0
    %243 = vmatprep.subr.mxu0 0.0
    %244 = vmatpush1.msra.mxu0 0.0
    %245 = vmatprep.subr.mxu0 0.0
    %246 = vmatpush1.msra.mxu0 0.0
    %247 = vmatprep.subr.mxu0 0.0
    %248 = vmatpush1.msra.mxu0 0.0
    %249 = vmatprep.subr.mxu0 0.0
    %250 = vmatpush1.msra.mxu0 0.0
    %251 = vmatprep.subr.mxu0 0.0
    %252 = vmatpush1.msra.mxu0 0.0
    %253 = vmatprep.subr.mxu0 0.0
    %254 = vmatpush1.msra.mxu0 0.0
    %255 = vmatprep.subr.mxu0 0.0
    %256 = vmatpush1.msra.mxu0 0.0
    %257 = vmatprep.subr.mxu0 0.0
    %258 = vmatpush1.msra.mxu0 0.0
    %259 = vmatprep.subr.mxu0 0.0
    %260 = vmatpush1.msra.mxu0 0.0
    %261 = vmatprep.subr.mxu0 0.0
    %262 = vmatpush1.msra.mxu0 0.0
    %263 = vmatprep.subr.mxu0 0.0
    %264 = vmatpush1.msra.mxu0 0.0
    %265 = vmatprep.subr.mxu0 0.0
    %266 = vmatpush1.msra.mxu0 0.0
    %267 = vmatprep.subr.mxu0 0.0
    %268 = vmatpush1.msra.mxu0 0.0
    %269 = vmatprep.subr.mxu0 0.0
    %270 = vmatpush1.msra.mxu0 0.0
    %271 = vmatprep.subr.mxu0 0.0
    %272 = vmatpush1.msra.mxu0 %v23
    %273 = vmatprep.subr.mxu0 0.0
    %274 = vmatpush2.msra.mxu0 0.0
    %275 = vmatprep.subr.mxu0 0.0
    %276 = vmatpush2.msra.mxu0 0.0
    %277 = vmatprep.subr.mxu0 0.0
    %278 = vmatpush2.msra.mxu0 0.0
    %279 = vmatprep.subr.mxu0 0.0
    %280 = vmatpush2.msra.mxu0 0.0
    %281 = vmatprep.subr.mxu0 0.0
    %282 = vmatpush2.msra.mxu0 0.0
    %283 = vmatprep.subr.mxu0 0.0
    %284 = vmatpush2.msra.mxu0 0.0
    %285 = vmatprep.subr.mxu0 0.0
    %286 = vmatpush2.msra.mxu0 0.0
    %287 = vmatprep.subr.mxu0 0.0
    %288 = vmatpush2.msra.mxu0 0.0
    %289 = vmatprep.subr.mxu0 0.0
    %290 = vmatpush2.msra.mxu0 0.0
    %291 = vmatprep.subr.mxu0 0.0
    %292 = vmatpush2.msra.mxu0 0.0
    %293 = vmatprep.subr.mxu0 0.0
    %294 = vmatpush2.msra.mxu0 0.0
    %295 = vmatprep.subr.mxu0 0.0
    %296 = vmatpush2.msra.mxu0 0.0
    %297 = vmatprep.subr.mxu0 0.0
    %298 = vmatpush2.msra.mxu0 0.0
    %299 = vmatprep.subr.mxu0 0.0
    %300 = vmatpush2.msra.mxu0 0.0
    %301 = vmatprep.subr.mxu0 0.0
    %302 = vmatpush2.msra.mxu0 0.0
    %303 = vmatprep.subr.mxu0 0.0
    %304 = vmatpush2.msra.mxu0 0.0
    %305 = vmatprep.mubr.f32.mxu0 0.0
    %306 = vmatmul.mubr.f32.gmra.mxu0 %v239
    %v307 = vpop.f32.mrf.mxu0
    %v308 = vadd.f32 %v236, %v307
    %v309 = vpop.f32.mrf.mxu0
    %310 = vdwg.mxu0
    %311 = vst [vmem:[#allocation2] sm:$0x3] %v308
    // Predicated region
    $region14: #{tpu_custom_call.1} parent=1 // pred_check
      _
    $region15: #{tpu_custom_call.1} parent=1 // pred_check_branch
      %313 = sbr.rel (0) target = $region17
    $region16: #{tpu_custom_call.1} parent=1 // pred_region
      %s315 = ssub.s32 32, 32
      %316 = vsyncadd [#allocation3], %s315
      %s318 = sshll.u32 [#allocation2], 4
      %s319 = int_to_ptr.vmem [resolvable:$true] %s318
      %321 = dma.vmem_to_hbm [thread:$0]  %s319, 32, %s3, [#allocation3]
    $region17: #{tpu_custom_call.1} parent=1 // pred_fallthru
      _
    // Predicated region
    $region18: #{tpu_custom_call.1} parent=1 // pred_check
      _
    $region19: #{tpu_custom_call.1} parent=1 // pred_check_branch
      %323 = sbr.rel (0) target = $region21
    $region20: #{tpu_custom_call.1} parent=1 // pred_region
      %324 = dma.done [#allocation3], 32
    $region21: #{tpu_custom_call.1} parent=1 // pred_fallthru
      _
    %325 = vsyncpa [#allocation3], 1

</llo_original>
